<compile_context>
chip_gen: v6e
topology: v6e:2x2x1
jax: 0.10.0
libtpu: 0.0.40
codegen_flags: <defaults>
</compile_context>

<pallas_src>
import jax
import jax.numpy as jnp
from jax.experimental import pallas as pl
from jax.experimental.pallas import tpu as pltpu

INPUT_SIZE = 7
HIDDEN_SIZE = 256
OUTPUT_SIZE = 2

IN_PAD = 8       # fc1 weight rows padded 7 -> 8 (clean sublane tile; row 7 unused)
OUT_W = 8        # output lanes: real 2 Q-values + 6 zero lanes (narrow writeback)
MAX_TILE_B = 1024


def _round_up(n, m):
    return ((n + m - 1) // m) * m


def _choose_tile_b(batch):
    """Batch tile: large enough to amortize per-grid-step overhead, small
    enough that big batches span >= ~4 grid steps so both v7x TensorCores get
    work through the "parallel" batch axis."""
    if batch <= 128:
        return max(8, _round_up(batch, 8))               # single tile, no waste
    return min(MAX_TILE_B, _round_up((batch + 3) // 4, 8))


def _dqn_kernel(x_ref, w1_ref, w2_ref, w3_ref, w4_ref, b_ref, o_ref):
    # x_ref : (tile_b, 7)   f32  raw input tile (no wrapper pad/cast)
    # w1_ref: (8, 256)      f32  fc1 weights (row 7 zero) — fc1 runs on the VPU
    # w2_ref: (256, 256)    bf16
    # w3_ref: (256, 256)    bf16
    # w4_ref: (256, 8)      bf16 (cols 2..7 zero)
    # b_ref : (8, 256)      f32  rows 0..3 = b1..b4 (b4 zero-padded), rows 4..7 zero
    # o_ref : (tile_b, 8)   f32  narrow output slab
    x = x_ref[...]
    w1 = w1_ref[...]
    b = b_ref[...]

    # fc1 + ReLU on the VPU: K=7 badly underfills the MXU, so do 7 broadcast
    # FMAs in exact f32 instead.  (dropout p=0.2 -> identity at inference)
    h = b[0:1, :] + x[:, 0:1] * w1[0:1, :]
    for k in range(1, INPUT_SIZE):
        h = h + x[:, k:k + 1] * w1[k:k + 1, :]
    h = jnp.maximum(h, 0.0)

    # fc2 + ReLU (MXU, bf16 operands, f32 accumulate; dropout -> identity)
    h = jnp.dot(h.astype(jnp.bfloat16), w2_ref[...],
                preferred_element_type=jnp.float32)
    h = jnp.maximum(h + b[1:2, :], 0.0)

    # fc3 + ReLU
    h = jnp.dot(h.astype(jnp.bfloat16), w3_ref[...],
                preferred_element_type=jnp.float32)
    h = jnp.maximum(h + b[2:3, :], 0.0)

    # fc4 (no activation) — narrow (tile_b, 8) store: 16x less writeback than
    # the old 128-lane slab.
    out = jnp.dot(h.astype(jnp.bfloat16), w4_ref[...],
                  preferred_element_type=jnp.float32)
    o_ref[...] = out + b[3:4, :OUT_W]


def pack_params(p):
    """Cast/pad raw f32 (in, out) params into the kernel layout. Do once,
    outside the RL loop."""
    bf = jnp.bfloat16
    w1 = jnp.pad(p["w1"], ((0, IN_PAD - INPUT_SIZE), (0, 0))).astype(jnp.float32)
    w2 = p["w2"].astype(bf)
    w3 = p["w3"].astype(bf)
    w4 = jnp.pad(p["w4"], ((0, 0), (0, OUT_W - OUTPUT_SIZE))).astype(bf)
    b4 = jnp.pad(p["b4"], ((0, 0), (0, HIDDEN_SIZE - OUTPUT_SIZE)))
    b = jnp.concatenate(
        [p["b1"], p["b2"], p["b3"], b4,
         jnp.zeros((4, HIDDEN_SIZE), jnp.float32)], axis=0).astype(jnp.float32)
    return dict(w1=w1, w2=w2, w3=w3, w4=w4, b=b)


@jax.jit
def dqn_forward(x, packed):
    """x: (B, INPUT_SIZE) float32. packed: output of pack_params()."""
    B = x.shape[0]
    tile_b = _choose_tile_b(B)
    n_tiles = pl.cdiv(B, tile_b)

    resident = lambda i: (0, 0)  # weights/biases: same block every grid step
    in_specs = [
        pl.BlockSpec((tile_b, INPUT_SIZE), lambda i: (i, 0)),     # x tile (f32)
        pl.BlockSpec((IN_PAD, HIDDEN_SIZE), resident),            # w1 (f32)
        pl.BlockSpec((HIDDEN_SIZE, HIDDEN_SIZE), resident),       # w2 (bf16)
        pl.BlockSpec((HIDDEN_SIZE, HIDDEN_SIZE), resident),       # w3 (bf16)
        pl.BlockSpec((HIDDEN_SIZE, OUT_W), resident),             # w4 (bf16)
        pl.BlockSpec((8, HIDDEN_SIZE), resident),                 # packed biases
    ]
    out_specs = pl.BlockSpec((tile_b, OUT_W), lambda i: (i, 0))

    flops = 2 * B * (INPUT_SIZE * HIDDEN_SIZE
                     + 2 * HIDDEN_SIZE * HIDDEN_SIZE
                     + HIDDEN_SIZE * OUT_W)
    bytes_accessed = (
        B * INPUT_SIZE * 4
        + packed["w1"].size * 4
        + (packed["w2"].size + packed["w3"].size + packed["w4"].size) * 2
        + packed["b"].size * 4
        + B * OUT_W * 4
    )

    out = pl.pallas_call(
        _dqn_kernel,
        out_shape=jax.ShapeDtypeStruct((B, OUT_W), jnp.float32),
        grid=(n_tiles,),
        in_specs=in_specs,
        out_specs=out_specs,
        compiler_params=pltpu.CompilerParams(
            dimension_semantics=("parallel",),      # v7x: shard batch over 2 TCs
            vmem_limit_bytes=32 * 1024 * 1024,      # safe on v5e/v6e/v7x
        ),
        cost_estimate=pl.CostEstimate(
            flops=flops, transcendentals=0, bytes_accessed=bytes_accessed),
    )(x, packed["w1"], packed["w2"], packed["w3"], packed["w4"], packed["b"])

    return out[:, :OUTPUT_SIZE]


def init_params(key):
    """PyTorch-default Linear init: U(-1/sqrt(fan_in), 1/sqrt(fan_in)).
    Weights stored as (in, out); biases as (1, out) rows. f32 master copy."""
    def linear(k, fan_in, fan_out):
        kw, kb = jax.random.split(k)
        bound = 1.0 / jnp.sqrt(jnp.float32(fan_in))
        w = jax.random.uniform(kw, (fan_in, fan_out), jnp.float32, -bound, bound)
        b = jax.random.uniform(kb, (1, fan_out), jnp.float32, -bound, bound)
        return w, b

    k1, k2, k3, k4 = jax.random.split(key, 4)
    w1, b1 = linear(k1, INPUT_SIZE, HIDDEN_SIZE)
    w2, b2 = linear(k2, HIDDEN_SIZE, HIDDEN_SIZE)
    w3, b3 = linear(k3, HIDDEN_SIZE, HIDDEN_SIZE)
    w4, b4 = linear(k4, HIDDEN_SIZE, OUTPUT_SIZE)
    return dict(w1=w1, b1=b1, w2=w2, b2=b2, w3=w3, b3=b3, w4=w4, b4=b4)


def dqn_reference(x, p):
    """Pure-JAX reference matching the kernel's precision choices:
    fc1 in f32, fc2/3/4 with bf16 operands + f32 accumulate (eval-mode
    dropout = identity)."""
    bf = jnp.bfloat16
    mm = lambda a, w: jnp.dot(a.astype(bf), w.astype(bf),
                              preferred_element_type=jnp.float32)
    h = jax.nn.relu(jnp.dot(x, p["w1"], preferred_element_type=jnp.float32)
                    + p["b1"])
    h = jax.nn.relu(mm(h, p["w2"]) + p["b2"])
    h = jax.nn.relu(mm(h, p["w3"]) + p["b3"])
    return mm(h, p["w4"]) + p["b4"]


if __name__ == "__main__":
    key = jax.random.PRNGKey(0)
    kp, kx = jax.random.split(key)

    params = init_params(kp)
    packed = pack_params(params)

    # Small single-tile batch (RL inference regime).
    x_small = jax.random.normal(kx, (8, INPUT_SIZE), jnp.float32)
    out_small = jax.block_until_ready(dqn_forward(x_small, packed))
    ref_small = dqn_reference(x_small, params)
    assert out_small.shape == (8, OUTPUT_SIZE), out_small.shape
    assert jnp.allclose(out_small, ref_small, atol=1e-2, rtol=1e-2), \
        "small-batch mismatch vs reference"

    # Multi-tile batch (throughput regime; exercises the parallel grid axis).
    x_big = jax.random.normal(jax.random.PRNGKey(1), (512, INPUT_SIZE),
                              jnp.float32)
    out_big = jax.block_until_ready(dqn_forward(x_big, packed))
    ref_big = dqn_reference(x_big, params)
    assert out_big.shape == (512, OUTPUT_SIZE), out_big.shape
    assert jnp.allclose(out_big, ref_big, atol=1e-2, rtol=1e-2), \
        "multi-tile mismatch vs reference"

    print("KERNEL_OK")
</pallas_src>

<mosaic_0001>
module attributes {stable_mosaic.version = 11 : i64} {
  func.func @_dqn_kernel(%arg0: i32, %arg1: memref<8x7xf32, #tpu.memory_space<vmem>>, %arg2: memref<8x256xf32, #tpu.memory_space<vmem>>, %arg3: memref<256x256xbf16, #tpu.memory_space<vmem>>, %arg4: memref<256x256xbf16, #tpu.memory_space<vmem>>, %arg5: memref<256x8xbf16, #tpu.memory_space<vmem>>, %arg6: memref<8x256xf32, #tpu.memory_space<vmem>>, %arg7: memref<8x8xf32, #tpu.memory_space<vmem>>) attributes {dimension_semantics = [#tpu.dimension_semantics<parallel>], iteration_bounds = array<i64: 1>, scalar_prefetch = 0 : i64, scratch_operands = 0 : i64, tpu.core_type = #tpu.core_type<tc>, window_params = [{transform_indices = @transform_0, window_bounds = array<i64: 8, 7>}, {pipeline_mode = #tpu.pipeline_mode<synchronous>, transform_indices = @transform_1, window_bounds = array<i64: 8, 256>}, {pipeline_mode = #tpu.pipeline_mode<synchronous>, transform_indices = @transform_2, window_bounds = array<i64: 256, 256>}, {pipeline_mode = #tpu.pipeline_mode<synchronous>, transform_indices = @transform_3, window_bounds = array<i64: 256, 256>}, {pipeline_mode = #tpu.pipeline_mode<synchronous>, transform_indices = @transform_4, window_bounds = array<i64: 256, 8>}, {pipeline_mode = #tpu.pipeline_mode<synchronous>, transform_indices = @transform_5, window_bounds = array<i64: 8, 256>}, {transform_indices = @transform_6, window_bounds = array<i64: 8, 8>}]} {
    %c0 = arith.constant 0 : index
    %c0_0 = arith.constant 0 : index
    %0 = vector.load %arg1[%c0, %c0_0] : memref<8x7xf32, #tpu.memory_space<vmem>>, vector<8x7xf32>
    %c0_1 = arith.constant 0 : index
    %c0_2 = arith.constant 0 : index
    %1 = vector.load %arg2[%c0_1, %c0_2] : memref<8x256xf32, #tpu.memory_space<vmem>>, vector<8x256xf32>
    %c0_3 = arith.constant 0 : index
    %c0_4 = arith.constant 0 : index
    %2 = vector.load %arg6[%c0_3, %c0_4] : memref<8x256xf32, #tpu.memory_space<vmem>>, vector<8x256xf32>
    %3 = vector.extract_strided_slice %2 {offsets = [0, 0], sizes = [1, 256], strides = [1, 1]} : vector<8x256xf32> to vector<1x256xf32>
    %4 = vector.extract_strided_slice %0 {offsets = [0, 0], sizes = [8, 1], strides = [1, 1]} : vector<8x7xf32> to vector<8x1xf32>
    %5 = vector.extract_strided_slice %1 {offsets = [0, 0], sizes = [1, 256], strides = [1, 1]} : vector<8x256xf32> to vector<1x256xf32>
    %6 = vector.broadcast %4 : vector<8x1xf32> to vector<8x256xf32>
    %7 = vector.broadcast %5 : vector<1x256xf32> to vector<8x256xf32>
    %8 = arith.mulf %6, %7 : vector<8x256xf32>
    %9 = vector.broadcast %3 : vector<1x256xf32> to vector<8x256xf32>
    %10 = arith.addf %9, %8 : vector<8x256xf32>
    %11 = vector.extract_strided_slice %0 {offsets = [0, 1], sizes = [8, 1], strides = [1, 1]} : vector<8x7xf32> to vector<8x1xf32>
    %12 = vector.extract_strided_slice %1 {offsets = [1, 0], sizes = [1, 256], strides = [1, 1]} : vector<8x256xf32> to vector<1x256xf32>
    %13 = vector.broadcast %11 : vector<8x1xf32> to vector<8x256xf32>
    %14 = vector.broadcast %12 : vector<1x256xf32> to vector<8x256xf32>
    %15 = arith.mulf %13, %14 : vector<8x256xf32>
    %16 = arith.addf %10, %15 : vector<8x256xf32>
    %17 = vector.extract_strided_slice %0 {offsets = [0, 2], sizes = [8, 1], strides = [1, 1]} : vector<8x7xf32> to vector<8x1xf32>
    %18 = vector.extract_strided_slice %1 {offsets = [2, 0], sizes = [1, 256], strides = [1, 1]} : vector<8x256xf32> to vector<1x256xf32>
    %19 = vector.broadcast %17 : vector<8x1xf32> to vector<8x256xf32>
    %20 = vector.broadcast %18 : vector<1x256xf32> to vector<8x256xf32>
    %21 = arith.mulf %19, %20 : vector<8x256xf32>
    %22 = arith.addf %16, %21 : vector<8x256xf32>
    %23 = vector.extract_strided_slice %0 {offsets = [0, 3], sizes = [8, 1], strides = [1, 1]} : vector<8x7xf32> to vector<8x1xf32>
    %24 = vector.extract_strided_slice %1 {offsets = [3, 0], sizes = [1, 256], strides = [1, 1]} : vector<8x256xf32> to vector<1x256xf32>
    %25 = vector.broadcast %23 : vector<8x1xf32> to vector<8x256xf32>
    %26 = vector.broadcast %24 : vector<1x256xf32> to vector<8x256xf32>
    %27 = arith.mulf %25, %26 : vector<8x256xf32>
    %28 = arith.addf %22, %27 : vector<8x256xf32>
    %29 = vector.extract_strided_slice %0 {offsets = [0, 4], sizes = [8, 1], strides = [1, 1]} : vector<8x7xf32> to vector<8x1xf32>
    %30 = vector.extract_strided_slice %1 {offsets = [4, 0], sizes = [1, 256], strides = [1, 1]} : vector<8x256xf32> to vector<1x256xf32>
    %31 = vector.broadcast %29 : vector<8x1xf32> to vector<8x256xf32>
    %32 = vector.broadcast %30 : vector<1x256xf32> to vector<8x256xf32>
    %33 = arith.mulf %31, %32 : vector<8x256xf32>
    %34 = arith.addf %28, %33 : vector<8x256xf32>
    %35 = vector.extract_strided_slice %0 {offsets = [0, 5], sizes = [8, 1], strides = [1, 1]} : vector<8x7xf32> to vector<8x1xf32>
    %36 = vector.extract_strided_slice %1 {offsets = [5, 0], sizes = [1, 256], strides = [1, 1]} : vector<8x256xf32> to vector<1x256xf32>
    %37 = vector.broadcast %35 : vector<8x1xf32> to vector<8x256xf32>
    %38 = vector.broadcast %36 : vector<1x256xf32> to vector<8x256xf32>
    %39 = arith.mulf %37, %38 : vector<8x256xf32>
    %40 = arith.addf %34, %39 : vector<8x256xf32>
    %41 = vector.extract_strided_slice %0 {offsets = [0, 6], sizes = [8, 1], strides = [1, 1]} : vector<8x7xf32> to vector<8x1xf32>
    %42 = vector.extract_strided_slice %1 {offsets = [6, 0], sizes = [1, 256], strides = [1, 1]} : vector<8x256xf32> to vector<1x256xf32>
    %43 = vector.broadcast %41 : vector<8x1xf32> to vector<8x256xf32>
    %44 = vector.broadcast %42 : vector<1x256xf32> to vector<8x256xf32>
    %45 = arith.mulf %43, %44 : vector<8x256xf32>
    %46 = arith.addf %40, %45 : vector<8x256xf32>
    %cst = arith.constant 0.000000e+00 : f32
    %47 = vector.broadcast %cst : f32 to vector<8x256xf32>
    %48 = arith.maximumf %46, %47 : vector<8x256xf32>
    %49 = arith.truncf %48 : vector<8x256xf32> to vector<8x256xbf16>
    %c0_5 = arith.constant 0 : index
    %c0_6 = arith.constant 0 : index
    %50 = vector.load %arg3[%c0_5, %c0_6] : memref<256x256xbf16, #tpu.memory_space<vmem>>, vector<256x256xbf16>
    %cst_7 = arith.constant dense<0.000000e+00> : vector<8x256xf32>
    %51 = tpu.matmul %49, %50, %cst_7 {dimension_numbers = #tpu.dot_dimension_numbers<[1], [0], [0], [1], [0, 0, 1, 1], [], []>} : vector<8x256xbf16>, vector<256x256xbf16>, vector<8x256xf32> -> vector<8x256xf32>
    %52 = vector.extract_strided_slice %2 {offsets = [1, 0], sizes = [1, 256], strides = [1, 1]} : vector<8x256xf32> to vector<1x256xf32>
    %53 = vector.broadcast %52 : vector<1x256xf32> to vector<8x256xf32>
    %54 = arith.addf %51, %53 : vector<8x256xf32>
    %cst_8 = arith.constant 0.000000e+00 : f32
    %55 = vector.broadcast %cst_8 : f32 to vector<8x256xf32>
    %56 = arith.maximumf %54, %55 : vector<8x256xf32>
    %57 = arith.truncf %56 : vector<8x256xf32> to vector<8x256xbf16>
    %c0_9 = arith.constant 0 : index
    %c0_10 = arith.constant 0 : index
    %58 = vector.load %arg4[%c0_9, %c0_10] : memref<256x256xbf16, #tpu.memory_space<vmem>>, vector<256x256xbf16>
    %cst_11 = arith.constant dense<0.000000e+00> : vector<8x256xf32>
    %59 = tpu.matmul %57, %58, %cst_11 {dimension_numbers = #tpu.dot_dimension_numbers<[1], [0], [0], [1], [0, 0, 1, 1], [], []>} : vector<8x256xbf16>, vector<256x256xbf16>, vector<8x256xf32> -> vector<8x256xf32>
    %60 = vector.extract_strided_slice %2 {offsets = [2, 0], sizes = [1, 256], strides = [1, 1]} : vector<8x256xf32> to vector<1x256xf32>
    %61 = vector.broadcast %60 : vector<1x256xf32> to vector<8x256xf32>
    %62 = arith.addf %59, %61 : vector<8x256xf32>
    %cst_12 = arith.constant 0.000000e+00 : f32
    %63 = vector.broadcast %cst_12 : f32 to vector<8x256xf32>
    %64 = arith.maximumf %62, %63 : vector<8x256xf32>
    %65 = arith.truncf %64 : vector<8x256xf32> to vector<8x256xbf16>
    %c0_13 = arith.constant 0 : index
    %c0_14 = arith.constant 0 : index
    %66 = vector.load %arg5[%c0_13, %c0_14] : memref<256x8xbf16, #tpu.memory_space<vmem>>, vector<256x8xbf16>
    %cst_15 = arith.constant dense<0.000000e+00> : vector<8x8xf32>
    %67 = tpu.matmul %65, %66, %cst_15 {dimension_numbers = #tpu.dot_dimension_numbers<[1], [0], [0], [1], [0, 0, 1, 1], [], []>} : vector<8x256xbf16>, vector<256x8xbf16>, vector<8x8xf32> -> vector<8x8xf32>
    %68 = vector.extract_strided_slice %2 {offsets = [3, 0], sizes = [1, 8], strides = [1, 1]} : vector<8x256xf32> to vector<1x8xf32>
    %69 = vector.broadcast %68 : vector<1x8xf32> to vector<8x8xf32>
    %70 = arith.addf %67, %69 : vector<8x8xf32>
    %c0_16 = arith.constant 0 : index
    %c0_17 = arith.constant 0 : index
    %71 = vector.load %arg7[%c0_16, %c0_17] : memref<8x8xf32, #tpu.memory_space<vmem>>, vector<8x8xf32>
    tpu.vector_store %arg7[%c0_16, %c0_17], %70 {strides = array<i32>} : memref<8x8xf32, #tpu.memory_space<vmem>>, vector<8x8xf32>,
    return
  }
  func.func @transform_0(%arg0: i32) -> (i32, i32) {
    %c0_i32 = arith.constant 0 : i32
    %c0_i32_0 = arith.constant 0 : i32
    return %arg0, %c0_i32 : i32, i32
  }
  func.func @transform_1(%arg0: i32) -> (i32, i32) {
    %c0_i32 = arith.constant 0 : i32
    %c0_i32_0 = arith.constant 0 : i32
    %c0_i32_1 = arith.constant 0 : i32
    return %c0_i32, %c0_i32_0 : i32, i32
  }
  func.func @transform_2(%arg0: i32) -> (i32, i32) {
    %c0_i32 = arith.constant 0 : i32
    %c0_i32_0 = arith.constant 0 : i32
    %c0_i32_1 = arith.constant 0 : i32
    return %c0_i32, %c0_i32_0 : i32, i32
  }
  func.func @transform_3(%arg0: i32) -> (i32, i32) {
    %c0_i32 = arith.constant 0 : i32
    %c0_i32_0 = arith.constant 0 : i32
    %c0_i32_1 = arith.constant 0 : i32
    return %c0_i32, %c0_i32_0 : i32, i32
  }
  func.func @transform_4(%arg0: i32) -> (i32, i32) {
    %c0_i32 = arith.constant 0 : i32
    %c0_i32_0 = arith.constant 0 : i32
    %c0_i32_1 = arith.constant 0 : i32
    return %c0_i32, %c0_i32_0 : i32, i32
  }
  func.func @transform_5(%arg0: i32) -> (i32, i32) {
    %c0_i32 = arith.constant 0 : i32
    %c0_i32_0 = arith.constant 0 : i32
    %c0_i32_1 = arith.constant 0 : i32
    return %c0_i32, %c0_i32_0 : i32, i32
  }
  func.func @transform_6(%arg0: i32) -> (i32, i32) {
    %c0_i32 = arith.constant 0 : i32
    %c0_i32_0 = arith.constant 0 : i32
    return %arg0, %c0_i32 : i32, i32
  }
}

</mosaic_0001>

<llo_original>
// kernel: dqn_forward.1
$region0: #{dqn_forward.1}
  #allocation0 [shape = 'u32[]', space=smem, size = 0x4, offset = 0x4, fixed_abs, tag = 'smem constant byte address 0x4 - core index']
  #allocation1 [shape = 'u32[144,128]{1,0:T(1,128)}', space=vmem, size = 0x12000, scoped, tag = 'internal scratch']
  %s0 = inlined_call_operand.vmem [shape: f32[8,7], index: 0, kind: input, shape index: {}]
  %s1 = inlined_call_operand.vmem [shape: f32[8,256], index: 1, kind: input, shape index: {}]
  %s2 = inlined_call_operand.hbm [shape: bf16[256,256], index: 2, kind: input, shape index: {}]
  %s3 = inlined_call_operand.hbm [shape: bf16[256,256], index: 3, kind: input, shape index: {}]
  %s4 = inlined_call_operand.vmem [shape: bf16[256,8], index: 4, kind: input, shape index: {}]
  %s5 = inlined_call_operand.vmem [shape: f32[8,256], index: 5, kind: input, shape index: {}]
  %s6 = inlined_call_operand.vmem [shape: f32[8,8], index: 6, kind: output, shape index: {}]
  %s7 = sld [smem:[#allocation0]]
  $region42: #{dqn_forward.1} parent=0
    _
  %s9 = ssub.s32 1, %s7
  %s10 = scalar_select 0, %s9, %s7
  $region1: #{dqn_forward.1} parent=0
    #allocation2 [shape = 'u8[131072]{0}', space=vmem, size = 0x20000, scoped, tag = 'input window, operand 2, single buffered']
    #allocation3 [shape = 's32[1]{0}', space=sflag, size = 0x4, scoped, tag = 'scoped memory for dqn_forward.1']
    #allocation4 [shape = 'u8[131072]{0}', space=vmem, size = 0x20000, scoped, tag = 'input window, operand 3, single buffered']
    #allocation5 [shape = 's32[1]{0}', space=sflag, size = 0x4, scoped, tag = 'scoped memory for dqn_forward.1']
    %11 = vsyncpa [#allocation3], 0
    %12 = vsyncpa [#allocation5], 0
    // Predicated region
    $region2: #{dqn_forward.1} parent=1 // pred_check
      _
    $region3: #{dqn_forward.1} parent=1 // pred_check_branch
      %14 = sbr.rel (0) target = $region5
    $region4: #{dqn_forward.1} parent=1 // pred_region
      _
    $region5: #{dqn_forward.1} parent=1 // pred_fallthru
      _
    // Predicated region
    $region6: #{dqn_forward.1} parent=1 // pred_check
      _
    $region7: #{dqn_forward.1} parent=1 // pred_check_branch
      %16 = sbr.rel (0) target = $region9
    $region8: #{dqn_forward.1} parent=1 // pred_region
      _
    $region9: #{dqn_forward.1} parent=1 // pred_fallthru
      _
    // Predicated region
    $region10: #{dqn_forward.1} parent=1 // pred_check
      _
    $region11: #{dqn_forward.1} parent=1 // pred_check_branch
      %18 = sbr.rel (0) target = $region13
    $region12: #{dqn_forward.1} parent=1 // pred_region
      %s20 = ssub.s32 4096, 4096
      %21 = vsyncadd [#allocation3], %s20
      %s22 = sshll.u32 [#allocation2], 4
      %s23 = int_to_ptr.vmem [resolvable:$true] %s22
      %28 = dma.hbm_to_vmem [thread:$0]  %s2, 4096, %s23, [#allocation3], 128, 128, 8
    $region13: #{dqn_forward.1} parent=1 // pred_fallthru
      _
    // Predicated region
    $region14: #{dqn_forward.1} parent=1 // pred_check
      _
    $region15: #{dqn_forward.1} parent=1 // pred_check_branch
      %30 = sbr.rel (0) target = $region17
    $region16: #{dqn_forward.1} parent=1 // pred_region
      %s32 = ssub.s32 4096, 4096
      %33 = vsyncadd [#allocation5], %s32
      %s34 = sshll.u32 [#allocation4], 4
      %s35 = int_to_ptr.vmem [resolvable:$true] %s34
      %40 = dma.hbm_to_vmem [thread:$0]  %s3, 4096, %s35, [#allocation5], 128, 128, 8
    $region17: #{dqn_forward.1} parent=1 // pred_fallthru
      _
    // Predicated region
    $region18: #{dqn_forward.1} parent=1 // pred_check
      _
    $region19: #{dqn_forward.1} parent=1 // pred_check_branch
      %42 = sbr.rel (0) target = $region21
    $region20: #{dqn_forward.1} parent=1 // pred_region
      _
    $region21: #{dqn_forward.1} parent=1 // pred_fallthru
      _
    // Predicated region
    $region22: #{dqn_forward.1} parent=1 // pred_check
      _
    $region23: #{dqn_forward.1} parent=1 // pred_check_branch
      %44 = sbr.rel (0) target = $region25
    $region24: #{dqn_forward.1} parent=1 // pred_region
      _
    $region25: #{dqn_forward.1} parent=1 // pred_fallthru
      _
    // Predicated region
    $region26: #{dqn_forward.1} parent=1 // pred_check
      _
    $region27: #{dqn_forward.1} parent=1 // pred_check_branch
      %46 = sbr.rel (0) target = $region29
    $region28: #{dqn_forward.1} parent=1 // pred_region
      %47 = dma.done [#allocation3], 4096
    $region29: #{dqn_forward.1} parent=1 // pred_fallthru
      _
    // Predicated region
    $region30: #{dqn_forward.1} parent=1 // pred_check
      _
    $region31: #{dqn_forward.1} parent=1 // pred_check_branch
      %49 = sbr.rel (0) target = $region33
    $region32: #{dqn_forward.1} parent=1 // pred_region
      %50 = dma.done [#allocation5], 4096
    $region33: #{dqn_forward.1} parent=1 // pred_fallthru
      _
    %v52 = vld [vmem:[%s0] sm:$0xff]
    %v53 = vld [vmem:[%s1] sm:$0xff]
    %v54 = vld [vmem:[%s1 + $0x8] sm:$0xff]
    %v55 = vld [vmem:[%s5] sm:$0xff]
    %v56 = vld [vmem:[%s5 + $0x8] sm:$0xff]
    %58 = vset.pattern.permute.xlu0 0
    %59 = vperm.xlu0 %58, %v52
    %v60 = vpop.permute.xlu0 %59
    %v62 = vlaneseq
    %v63 = vshrl.u32 %v62, 7
    %v64 = vsub.s32 0, %v63
    %v65 = vrot.slane %v53, %v64
    %v66 = vlaneseq
    %v67 = vshrl.u32 %v66, 7
    %v68 = vsub.s32 0, %v67
    %v69 = vrot.slane %v54, %v68
    %v70 = vmul.f32 %v60, %v65
    %v71 = vmul.f32 %v60, %v69
    %v72 = vlaneseq
    %v73 = vshrl.u32 %v72, 7
    %v74 = vsub.s32 0, %v73
    %v75 = vrot.slane %v55, %v74
    %v76 = vlaneseq
    %v77 = vshrl.u32 %v76, 7
    %v78 = vsub.s32 0, %v77
    %v79 = vrot.slane %v56, %v78
    %v80 = vadd.f32 %v75, %v70
    %v81 = vadd.f32 %v79, %v71
    %82 = vset.pattern.permute.xlu0 1
    %83 = vperm.xlu0 %82, %v52
    %v84 = vpop.permute.xlu0 %83
    %v86 = vlaneseq
    %v87 = vshrl.u32 %v86, 7
    %v88 = vsub.s32 1, %v87
    %v89 = vrot.slane %v53, %v88
    %v90 = vlaneseq
    %v91 = vshrl.u32 %v90, 7
    %v92 = vsub.s32 1, %v91
    %v93 = vrot.slane %v54, %v92
    %v94 = vmul.f32 %v84, %v89
    %v95 = vmul.f32 %v84, %v93
    %v96 = vadd.f32 %v80, %v94
    %v97 = vadd.f32 %v81, %v95
    %98 = vset.pattern.permute.xlu0 2
    %99 = vperm.xlu0 %98, %v52
    %v100 = vpop.permute.xlu0 %99
    %v102 = vlaneseq
    %v103 = vshrl.u32 %v102, 7
    %v104 = vsub.s32 2, %v103
    %v105 = vrot.slane %v53, %v104
    %v106 = vlaneseq
    %v107 = vshrl.u32 %v106, 7
    %v108 = vsub.s32 2, %v107
    %v109 = vrot.slane %v54, %v108
    %v110 = vmul.f32 %v100, %v105
    %v111 = vmul.f32 %v100, %v109
    %v112 = vadd.f32 %v96, %v110
    %v113 = vadd.f32 %v97, %v111
    %114 = vset.pattern.permute.xlu0 3
    %115 = vperm.xlu0 %114, %v52
    %v116 = vpop.permute.xlu0 %115
    %v118 = vlaneseq
    %v119 = vshrl.u32 %v118, 7
    %v120 = vsub.s32 3, %v119
    %v121 = vrot.slane %v53, %v120
    %v122 = vlaneseq
    %v123 = vshrl.u32 %v122, 7
    %v124 = vsub.s32 3, %v123
    %v125 = vrot.slane %v54, %v124
    %v126 = vmul.f32 %v116, %v121
    %v127 = vmul.f32 %v116, %v125
    %v128 = vadd.f32 %v112, %v126
    %v129 = vadd.f32 %v113, %v127
    %130 = vset.pattern.permute.xlu0 4
    %131 = vperm.xlu0 %130, %v52
    %v132 = vpop.permute.xlu0 %131
    %v134 = vlaneseq
    %v135 = vshrl.u32 %v134, 7
    %v136 = vsub.s32 4, %v135
    %v137 = vrot.slane %v53, %v136
    %v138 = vlaneseq
    %v139 = vshrl.u32 %v138, 7
    %v140 = vsub.s32 4, %v139
    %v141 = vrot.slane %v54, %v140
    %v142 = vmul.f32 %v132, %v137
    %v143 = vmul.f32 %v132, %v141
    %v144 = vadd.f32 %v128, %v142
    %v145 = vadd.f32 %v129, %v143
    %146 = vset.pattern.permute.xlu0 5
    %147 = vperm.xlu0 %146, %v52
    %v148 = vpop.permute.xlu0 %147
    %v150 = vlaneseq
    %v151 = vshrl.u32 %v150, 7
    %v152 = vsub.s32 5, %v151
    %v153 = vrot.slane %v53, %v152
    %v154 = vlaneseq
    %v155 = vshrl.u32 %v154, 7
    %v156 = vsub.s32 5, %v155
    %v157 = vrot.slane %v54, %v156
    %v158 = vmul.f32 %v148, %v153
    %v159 = vmul.f32 %v148, %v157
    %v160 = vadd.f32 %v144, %v158
    %v161 = vadd.f32 %v145, %v159
    %162 = vset.pattern.permute.xlu0 6
    %163 = vperm.xlu0 %162, %v52
    %v164 = vpop.permute.xlu0 %163
    %v166 = vlaneseq
    %v167 = vshrl.u32 %v166, 7
    %v168 = vsub.s32 6, %v167
    %v169 = vrot.slane %v53, %v168
    %v170 = vlaneseq
    %v171 = vshrl.u32 %v170, 7
    %v172 = vsub.s32 6, %v171
    %v173 = vrot.slane %v54, %v172
    %v174 = vmul.f32 %v164, %v169
    %v175 = vmul.f32 %v164, %v173
    %v176 = vadd.f32 %v160, %v174
    %v177 = vadd.f32 %v161, %v175
    %v178 = vmax.f32 %v176, 0.0
    %v179 = vmax.f32 %v177, 0.0
    %v180 = vpack.c.bf16 %v178, %v178
    %v181 = vpack.c.bf16 %v179, %v179
    %v182 = vld [vmem:[#allocation2] sm:$0xff]
    %v183 = vld [vmem:[#allocation2 + $0x8] sm:$0xff]
    %v184 = vld [vmem:[#allocation2 + $0x10] sm:$0xff]
    %v185 = vld [vmem:[#allocation2 + $0x18] sm:$0xff]
    %v186 = vld [vmem:[#allocation2 + $0x20] sm:$0xff]
    %v187 = vld [vmem:[#allocation2 + $0x28] sm:$0xff]
    %v188 = vld [vmem:[#allocation2 + $0x30] sm:$0xff]
    %v189 = vld [vmem:[#allocation2 + $0x38] sm:$0xff]
    %v190 = vld [vmem:[#allocation2 + $0x40] sm:$0xff]
    %v191 = vld [vmem:[#allocation2 + $0x48] sm:$0xff]
    %v192 = vld [vmem:[#allocation2 + $0x50] sm:$0xff]
    %v193 = vld [vmem:[#allocation2 + $0x58] sm:$0xff]
    %v194 = vld [vmem:[#allocation2 + $0x60] sm:$0xff]
    %v195 = vld [vmem:[#allocation2 + $0x68] sm:$0xff]
    %v196 = vld [vmem:[#allocation2 + $0x70] sm:$0xff]
    %v197 = vld [vmem:[#allocation2 + $0x78] sm:$0xff]
    %v198 = vld [vmem:[#allocation2 + $0x80] sm:$0xff]
    %v199 = vld [vmem:[#allocation2 + $0x88] sm:$0xff]
    %v200 = vld [vmem:[#allocation2 + $0x90] sm:$0xff]
    %v201 = vld [vmem:[#allocation2 + $0x98] sm:$0xff]
    %v202 = vld [vmem:[#allocation2 + $0xa0] sm:$0xff]
    %v203 = vld [vmem:[#allocation2 + $0xa8] sm:$0xff]
    %v204 = vld [vmem:[#allocation2 + $0xb0] sm:$0xff]
    %v205 = vld [vmem:[#allocation2 + $0xb8] sm:$0xff]
    %v206 = vld [vmem:[#allocation2 + $0xc0] sm:$0xff]
    %v207 = vld [vmem:[#allocation2 + $0xc8] sm:$0xff]
    %v208 = vld [vmem:[#allocation2 + $0xd0] sm:$0xff]
    %v209 = vld [vmem:[#allocation2 + $0xd8] sm:$0xff]
    %v210 = vld [vmem:[#allocation2 + $0xe0] sm:$0xff]
    %v211 = vld [vmem:[#allocation2 + $0xe8] sm:$0xff]
    %v212 = vld [vmem:[#allocation2 + $0xf0] sm:$0xff]
    %v213 = vld [vmem:[#allocation2 + $0xf8] sm:$0xff]
    %v214 = vlaneseq
    %v215 = vshrl.u32 %v214, 7
    %v216 = vsub.s32 1, %v215
    %v217 = vrot.slane %v55, %v216
    %v218 = vlaneseq
    %v219 = vshrl.u32 %v218, 7
    %v220 = vsub.s32 1, %v219
    %v221 = vrot.slane %v56, %v220
    %v254 = vunpack.c.l.b16 %v182
    %v255 = vunpack.c.h.b16 %v182
    %v256 = vunpack.c.l.b16 %v183
    %v257 = vunpack.c.h.b16 %v183
    %v258 = vunpack.c.l.b16 %v184
    %v259 = vunpack.c.h.b16 %v184
    %v260 = vunpack.c.l.b16 %v185
    %v261 = vunpack.c.h.b16 %v185
    %v262 = vunpack.c.l.b16 %v186
    %v263 = vunpack.c.h.b16 %v186
    %v264 = vunpack.c.l.b16 %v187
    %v265 = vunpack.c.h.b16 %v187
    %v266 = vunpack.c.l.b16 %v188
    %v267 = vunpack.c.h.b16 %v188
    %v268 = vunpack.c.l.b16 %v189
    %v269 = vunpack.c.h.b16 %v189
    %v270 = vunpack.c.l.b16 %v190
    %v271 = vunpack.c.h.b16 %v190
    %v272 = vunpack.c.l.b16 %v191
    %v273 = vunpack.c.h.b16 %v191
    %v274 = vunpack.c.l.b16 %v192
    %v275 = vunpack.c.h.b16 %v192
    %v276 = vunpack.c.l.b16 %v193
    %v277 = vunpack.c.h.b16 %v193
    %v278 = vunpack.c.l.b16 %v194
    %v279 = vunpack.c.h.b16 %v194
    %v280 = vunpack.c.l.b16 %v195
    %v281 = vunpack.c.h.b16 %v195
    %v282 = vunpack.c.l.b16 %v196
    %v283 = vunpack.c.h.b16 %v196
    %v284 = vunpack.c.l.b16 %v197
    %v285 = vunpack.c.h.b16 %v197
    %v286 = vunpack.c.l.b16 %v198
    %v287 = vunpack.c.h.b16 %v198
    %v288 = vunpack.c.l.b16 %v199
    %v289 = vunpack.c.h.b16 %v199
    %v290 = vunpack.c.l.b16 %v200
    %v291 = vunpack.c.h.b16 %v200
    %v292 = vunpack.c.l.b16 %v201
    %v293 = vunpack.c.h.b16 %v201
    %v294 = vunpack.c.l.b16 %v202
    %v295 = vunpack.c.h.b16 %v202
    %v296 = vunpack.c.l.b16 %v203
    %v297 = vunpack.c.h.b16 %v203
    %v298 = vunpack.c.l.b16 %v204
    %v299 = vunpack.c.h.b16 %v204
    %v300 = vunpack.c.l.b16 %v205
    %v301 = vunpack.c.h.b16 %v205
    %v302 = vunpack.c.l.b16 %v206
    %v303 = vunpack.c.h.b16 %v206
    %v304 = vunpack.c.l.b16 %v207
    %v305 = vunpack.c.h.b16 %v207
    %v306 = vunpack.c.l.b16 %v208
    %v307 = vunpack.c.h.b16 %v208
    %v308 = vunpack.c.l.b16 %v209
    %v309 = vunpack.c.h.b16 %v209
    %v310 = vunpack.c.l.b16 %v210
    %v311 = vunpack.c.h.b16 %v210
    %v312 = vunpack.c.l.b16 %v211
    %v313 = vunpack.c.h.b16 %v211
    %v314 = vunpack.c.l.b16 %v212
    %v315 = vunpack.c.h.b16 %v212
    %v316 = vunpack.c.l.b16 %v213
    %v317 = vunpack.c.h.b16 %v213
    %v318 = vpack.c.b16 %v256, %v254
    %v319 = vpack.c.b16 %v257, %v255
    %v320 = vpack.c.b16 %v260, %v258
    %v321 = vpack.c.b16 %v261, %v259
    %v322 = vpack.c.b16 %v264, %v262
    %v323 = vpack.c.b16 %v265, %v263
    %v324 = vpack.c.b16 %v268, %v266
    %v325 = vpack.c.b16 %v269, %v267
    %v326 = vpack.c.b16 %v272, %v270
    %v327 = vpack.c.b16 %v273, %v271
    %v328 = vpack.c.b16 %v276, %v274
    %v329 = vpack.c.b16 %v277, %v275
    %v330 = vpack.c.b16 %v280, %v278
    %v331 = vpack.c.b16 %v281, %v279
    %v332 = vpack.c.b16 %v284, %v282
    %v333 = vpack.c.b16 %v285, %v283
    %v334 = vpack.c.b16 %v288, %v286
    %v335 = vpack.c.b16 %v289, %v287
    %v336 = vpack.c.b16 %v292, %v290
    %v337 = vpack.c.b16 %v293, %v291
    %v338 = vpack.c.b16 %v296, %v294
    %v339 = vpack.c.b16 %v297, %v295
    %v340 = vpack.c.b16 %v300, %v298
    %v341 = vpack.c.b16 %v301, %v299
    %v342 = vpack.c.b16 %v304, %v302
    %v343 = vpack.c.b16 %v305, %v303
    %v344 = vpack.c.b16 %v308, %v306
    %v345 = vpack.c.b16 %v309, %v307
    %v346 = vpack.c.b16 %v312, %v310
    %v347 = vpack.c.b16 %v313, %v311
    %v348 = vpack.c.b16 %v316, %v314
    %v349 = vpack.c.b16 %v317, %v315
    %382 = vmatprep.subr.bf16.mxu0 %v333
    %383 = vmatpush1.bf16.msra.mxu0 %v332
    %384 = vmatprep.subr.bf16.mxu0 %v331
    %385 = vmatpush1.bf16.msra.mxu0 %v330
    %386 = vmatprep.subr.bf16.mxu0 %v329
    %387 = vmatpush1.bf16.msra.mxu0 %v328
    %388 = vmatprep.subr.bf16.mxu0 %v327
    %389 = vmatpush1.bf16.msra.mxu0 %v326
    %390 = vmatprep.subr.bf16.mxu0 %v325
    %391 = vmatpush1.bf16.msra.mxu0 %v324
    %392 = vmatprep.subr.bf16.mxu0 %v323
    %393 = vmatpush1.bf16.msra.mxu0 %v322
    %394 = vmatprep.subr.bf16.mxu0 %v321
    %395 = vmatpush1.bf16.msra.mxu0 %v320
    %396 = vmatprep.subr.bf16.mxu0 %v319
    %397 = vmatpush1.bf16.msra.mxu0 %v318
    %398 = vmatprep.subr.bf16.mxu0 %v349
    %399 = vmatpush2.bf16.msra.mxu0 %v348
    %400 = vmatprep.subr.bf16.mxu0 %v347
    %401 = vmatpush2.bf16.msra.mxu0 %v346
    %402 = vmatprep.subr.bf16.mxu0 %v345
    %403 = vmatpush2.bf16.msra.mxu0 %v344
    %404 = vmatprep.subr.bf16.mxu0 %v343
    %405 = vmatpush2.bf16.msra.mxu0 %v342
    %406 = vmatprep.subr.bf16.mxu0 %v341
    %407 = vmatpush2.bf16.msra.mxu0 %v340
    %408 = vmatprep.subr.bf16.mxu0 %v339
    %409 = vmatpush2.bf16.msra.mxu0 %v338
    %410 = vmatprep.subr.bf16.mxu0 %v337
    %411 = vmatpush2.bf16.msra.mxu0 %v336
    %412 = vmatprep.subr.bf16.mxu0 %v335
    %413 = vmatpush2.bf16.msra.mxu0 %v334
    %414 = vmatprep.mubr.bf16.mxu0 %v181
    %415 = vmatmul.mubr.bf16.gmra.mxu0 %v180
    %v416 = vpop.f32.mrf.mxu0
    %v417 = vadd.f32 %v217, %v416
    %v418 = vpop.f32.mrf.mxu0
    %v419 = vadd.f32 %v221, %v418
    %v420 = vpop.f32.mrf.mxu0
    %v421 = vpop.f32.mrf.mxu0
    %422 = vdwg.mxu0
    %v423 = vmax.f32 %v417, 0.0
    %v424 = vmax.f32 %v419, 0.0
    %v425 = vpack.c.bf16 %v423, %v423
    %v426 = vpack.c.bf16 %v424, %v424
    %v427 = vld [vmem:[#allocation4] sm:$0xff]
    %v428 = vld [vmem:[#allocation4 + $0x8] sm:$0xff]
    %v429 = vld [vmem:[#allocation4 + $0x10] sm:$0xff]
    %v430 = vld [vmem:[#allocation4 + $0x18] sm:$0xff]
    %v431 = vld [vmem:[#allocation4 + $0x20] sm:$0xff]
    %v432 = vld [vmem:[#allocation4 + $0x28] sm:$0xff]
    %v433 = vld [vmem:[#allocation4 + $0x30] sm:$0xff]
    %v434 = vld [vmem:[#allocation4 + $0x38] sm:$0xff]
    %v435 = vld [vmem:[#allocation4 + $0x40] sm:$0xff]
    %v436 = vld [vmem:[#allocation4 + $0x48] sm:$0xff]
    %v437 = vld [vmem:[#allocation4 + $0x50] sm:$0xff]
    %v438 = vld [vmem:[#allocation4 + $0x58] sm:$0xff]
    %v439 = vld [vmem:[#allocation4 + $0x60] sm:$0xff]
    %v440 = vld [vmem:[#allocation4 + $0x68] sm:$0xff]
    %v441 = vld [vmem:[#allocation4 + $0x70] sm:$0xff]
    %v442 = vld [vmem:[#allocation4 + $0x78] sm:$0xff]
    %v443 = vld [vmem:[#allocation4 + $0x80] sm:$0xff]
    %v444 = vld [vmem:[#allocation4 + $0x88] sm:$0xff]
    %v445 = vld [vmem:[#allocation4 + $0x90] sm:$0xff]
    %v446 = vld [vmem:[#allocation4 + $0x98] sm:$0xff]
    %v447 = vld [vmem:[#allocation4 + $0xa0] sm:$0xff]
    %v448 = vld [vmem:[#allocation4 + $0xa8] sm:$0xff]
    %v449 = vld [vmem:[#allocation4 + $0xb0] sm:$0xff]
    %v450 = vld [vmem:[#allocation4 + $0xb8] sm:$0xff]
    %v451 = vld [vmem:[#allocation4 + $0xc0] sm:$0xff]
    %v452 = vld [vmem:[#allocation4 + $0xc8] sm:$0xff]
    %v453 = vld [vmem:[#allocation4 + $0xd0] sm:$0xff]
    %v454 = vld [vmem:[#allocation4 + $0xd8] sm:$0xff]
    %v455 = vld [vmem:[#allocation4 + $0xe0] sm:$0xff]
    %v456 = vld [vmem:[#allocation4 + $0xe8] sm:$0xff]
    %v457 = vld [vmem:[#allocation4 + $0xf0] sm:$0xff]
    %v458 = vld [vmem:[#allocation4 + $0xf8] sm:$0xff]
    %v459 = vlaneseq
    %v460 = vshrl.u32 %v459, 7
    %v461 = vsub.s32 2, %v460
    %v462 = vrot.slane %v55, %v461
    %v463 = vlaneseq
    %v464 = vshrl.u32 %v463, 7
    %v465 = vsub.s32 2, %v464
    %v466 = vrot.slane %v56, %v465
    %v499 = vunpack.c.l.b16 %v427
    %v500 = vunpack.c.h.b16 %v427
    %v501 = vunpack.c.l.b16 %v428
    %v502 = vunpack.c.h.b16 %v428
    %v503 = vunpack.c.l.b16 %v429
    %v504 = vunpack.c.h.b16 %v429
    %v505 = vunpack.c.l.b16 %v430
    %v506 = vunpack.c.h.b16 %v430
    %v507 = vunpack.c.l.b16 %v431
    %v508 = vunpack.c.h.b16 %v431
    %v509 = vunpack.c.l.b16 %v432
    %v510 = vunpack.c.h.b16 %v432
    %v511 = vunpack.c.l.b16 %v433
    %v512 = vunpack.c.h.b16 %v433
    %v513 = vunpack.c.l.b16 %v434
    %v514 = vunpack.c.h.b16 %v434
    %v515 = vunpack.c.l.b16 %v435
    %v516 = vunpack.c.h.b16 %v435
    %v517 = vunpack.c.l.b16 %v436
    %v518 = vunpack.c.h.b16 %v436
    %v519 = vunpack.c.l.b16 %v437
    %v520 = vunpack.c.h.b16 %v437
    %v521 = vunpack.c.l.b16 %v438
    %v522 = vunpack.c.h.b16 %v438
    %v523 = vunpack.c.l.b16 %v439
    %v524 = vunpack.c.h.b16 %v439
    %v525 = vunpack.c.l.b16 %v440
    %v526 = vunpack.c.h.b16 %v440
    %v527 = vunpack.c.l.b16 %v441
    %v528 = vunpack.c.h.b16 %v441
    %v529 = vunpack.c.l.b16 %v442
    %v530 = vunpack.c.h.b16 %v442
    %v531 = vunpack.c.l.b16 %v443
    %v532 = vunpack.c.h.b16 %v443
    %v533 = vunpack.c.l.b16 %v444
    %v534 = vunpack.c.h.b16 %v444
    %v535 = vunpack.c.l.b16 %v445
    %v536 = vunpack.c.h.b16 %v445
    %v537 = vunpack.c.l.b16 %v446
    %v538 = vunpack.c.h.b16 %v446
    %v539 = vunpack.c.l.b16 %v447
    %v540 = vunpack.c.h.b16 %v447
    %v541 = vunpack.c.l.b16 %v448
    %v542 = vunpack.c.h.b16 %v448
    %v543 = vunpack.c.l.b16 %v449
    %v544 = vunpack.c.h.b16 %v449
    %v545 = vunpack.c.l.b16 %v450
    %v546 = vunpack.c.h.b16 %v450
    %v547 = vunpack.c.l.b16 %v451
    %v548 = vunpack.c.h.b16 %v451
    %v549 = vunpack.c.l.b16 %v452
    %v550 = vunpack.c.h.b16 %v452
    %v551 = vunpack.c.l.b16 %v453
    %v552 = vunpack.c.h.b16 %v453
    %v553 = vunpack.c.l.b16 %v454
    %v554 = vunpack.c.h.b16 %v454
    %v555 = vunpack.c.l.b16 %v455
    %v556 = vunpack.c.h.b16 %v455
    %v557 = vunpack.c.l.b16 %v456
    %v558 = vunpack.c.h.b16 %v456
    %v559 = vunpack.c.l.b16 %v457
    %v560 = vunpack.c.h.b16 %v457
    %v561 = vunpack.c.l.b16 %v458
    %v562 = vunpack.c.h.b16 %v458
    %v563 = vpack.c.b16 %v501, %v499
    %v564 = vpack.c.b16 %v502, %v500
    %v565 = vpack.c.b16 %v505, %v503
    %v566 = vpack.c.b16 %v506, %v504
    %v567 = vpack.c.b16 %v509, %v507
    %v568 = vpack.c.b16 %v510, %v508
    %v569 = vpack.c.b16 %v513, %v511
    %v570 = vpack.c.b16 %v514, %v512
    %v571 = vpack.c.b16 %v517, %v515
    %v572 = vpack.c.b16 %v518, %v516
    %v573 = vpack.c.b16 %v521, %v519
    %v574 = vpack.c.b16 %v522, %v520
    %v575 = vpack.c.b16 %v525, %v523
    %v576 = vpack.c.b16 %v526, %v524
    %v577 = vpack.c.b16 %v529, %v527
    %v578 = vpack.c.b16 %v530, %v528
    %v579 = vpack.c.b16 %v533, %v531
    %v580 = vpack.c.b16 %v534, %v532
    %v581 = vpack.c.b16 %v537, %v535
    %v582 = vpack.c.b16 %v538, %v536
    %v583 = vpack.c.b16 %v541, %v539
    %v584 = vpack.c.b16 %v542, %v540
    %v585 = vpack.c.b16 %v545, %v543
    %v586 = vpack.c.b16 %v546, %v544
    %v587 = vpack.c.b16 %v549, %v547
    %v588 = vpack.c.b16 %v550, %v548
    %v589 = vpack.c.b16 %v553, %v551
    %v590 = vpack.c.b16 %v554, %v552
    %v591 = vpack.c.b16 %v557, %v555
    %v592 = vpack.c.b16 %v558, %v556
    %v593 = vpack.c.b16 %v561, %v559
    %v594 = vpack.c.b16 %v562, %v560
    %627 = vmatprep.subr.bf16.mxu0 %v578
    %628 = vmatpush1.bf16.msra.mxu0 %v577
    %629 = vmatprep.subr.bf16.mxu0 %v576
    %630 = vmatpush1.bf16.msra.mxu0 %v575
    %631 = vmatprep.subr.bf16.mxu0 %v574
    %632 = vmatpush1.bf16.msra.mxu0 %v573
    %633 = vmatprep.subr.bf16.mxu0 %v572
    %634 = vmatpush1.bf16.msra.mxu0 %v571
    %635 = vmatprep.subr.bf16.mxu0 %v570
    %636 = vmatpush1.bf16.msra.mxu0 %v569
    %637 = vmatprep.subr.bf16.mxu0 %v568
    %638 = vmatpush1.bf16.msra.mxu0 %v567
    %639 = vmatprep.subr.bf16.mxu0 %v566
    %640 = vmatpush1.bf16.msra.mxu0 %v565
    %641 = vmatprep.subr.bf16.mxu0 %v564
    %642 = vmatpush1.bf16.msra.mxu0 %v563
    %643 = vmatprep.subr.bf16.mxu0 %v594
    %644 = vmatpush2.bf16.msra.mxu0 %v593
    %645 = vmatprep.subr.bf16.mxu0 %v592
    %646 = vmatpush2.bf16.msra.mxu0 %v591
    %647 = vmatprep.subr.bf16.mxu0 %v590
    %648 = vmatpush2.bf16.msra.mxu0 %v589
    %649 = vmatprep.subr.bf16.mxu0 %v588
    %650 = vmatpush2.bf16.msra.mxu0 %v587
    %651 = vmatprep.subr.bf16.mxu0 %v586
    %652 = vmatpush2.bf16.msra.mxu0 %v585
    %653 = vmatprep.subr.bf16.mxu0 %v584
    %654 = vmatpush2.bf16.msra.mxu0 %v583
    %655 = vmatprep.subr.bf16.mxu0 %v582
    %656 = vmatpush2.bf16.msra.mxu0 %v581
    %657 = vmatprep.subr.bf16.mxu0 %v580
    %658 = vmatpush2.bf16.msra.mxu0 %v579
    %659 = vmatprep.mubr.bf16.mxu0 %v426
    %660 = vmatmul.mubr.bf16.gmra.mxu0 %v425
    %v661 = vpop.f32.mrf.mxu0
    %v662 = vadd.f32 %v462, %v661
    %v663 = vpop.f32.mrf.mxu0
    %v664 = vadd.f32 %v466, %v663
    %v665 = vpop.f32.mrf.mxu0
    %v666 = vpop.f32.mrf.mxu0
    %667 = vdwg.mxu0
    %v668 = vmax.f32 %v662, 0.0
    %v669 = vmax.f32 %v664, 0.0
    %v670 = vpack.c.bf16 %v668, %v668
    %v671 = vpack.c.bf16 %v669, %v669
    %v672 = vld [vmem:[%s4] sm:$0xf]
    %v673 = vld [vmem:[%s4 + $0x4] sm:$0xf]
    %v674 = vld [vmem:[%s4 + $0x8] sm:$0xf]
    %v675 = vld [vmem:[%s4 + $0xc] sm:$0xf]
    %v676 = vld [vmem:[%s4 + $0x10] sm:$0xf]
    %v677 = vld [vmem:[%s4 + $0x14] sm:$0xf]
    %v678 = vld [vmem:[%s4 + $0x18] sm:$0xf]
    %v679 = vld [vmem:[%s4 + $0x1c] sm:$0xf]
    %v680 = vld [vmem:[%s4 + $0x20] sm:$0xf]
    %v681 = vld [vmem:[%s4 + $0x24] sm:$0xf]
    %v682 = vld [vmem:[%s4 + $0x28] sm:$0xf]
    %v683 = vld [vmem:[%s4 + $0x2c] sm:$0xf]
    %v684 = vld [vmem:[%s4 + $0x30] sm:$0xf]
    %v685 = vld [vmem:[%s4 + $0x34] sm:$0xf]
    %v686 = vld [vmem:[%s4 + $0x38] sm:$0xf]
    %v687 = vld [vmem:[%s4 + $0x3c] sm:$0xf]
    %v688 = vld [vmem:[%s4 + $0x40] sm:$0xf]
    %v689 = vld [vmem:[%s4 + $0x44] sm:$0xf]
    %v690 = vld [vmem:[%s4 + $0x48] sm:$0xf]
    %v691 = vld [vmem:[%s4 + $0x4c] sm:$0xf]
    %v692 = vld [vmem:[%s4 + $0x50] sm:$0xf]
    %v693 = vld [vmem:[%s4 + $0x54] sm:$0xf]
    %v694 = vld [vmem:[%s4 + $0x58] sm:$0xf]
    %v695 = vld [vmem:[%s4 + $0x5c] sm:$0xf]
    %v696 = vld [vmem:[%s4 + $0x60] sm:$0xf]
    %v697 = vld [vmem:[%s4 + $0x64] sm:$0xf]
    %v698 = vld [vmem:[%s4 + $0x68] sm:$0xf]
    %v699 = vld [vmem:[%s4 + $0x6c] sm:$0xf]
    %v700 = vld [vmem:[%s4 + $0x70] sm:$0xf]
    %v701 = vld [vmem:[%s4 + $0x74] sm:$0xf]
    %v702 = vld [vmem:[%s4 + $0x78] sm:$0xf]
    %v703 = vld [vmem:[%s4 + $0x7c] sm:$0xf]
    %v704 = vlaneseq
    %v705 = vshrl.u32 %v704, 7
    %v706 = vsub.s32 3, %v705
    %v707 = vrot.slane %v55, %v706
    %v740 = vunpack.c.l.b16 %v672
    %v741 = vunpack.c.l.b16 %v673
    %v742 = vunpack.c.l.b16 %v674
    %v743 = vunpack.c.l.b16 %v675
    %v744 = vunpack.c.l.b16 %v676
    %v745 = vunpack.c.l.b16 %v677
    %v746 = vunpack.c.l.b16 %v678
    %v747 = vunpack.c.l.b16 %v679
    %v748 = vunpack.c.l.b16 %v680
    %v749 = vunpack.c.l.b16 %v681
    %v750 = vunpack.c.l.b16 %v682
    %v751 = vunpack.c.l.b16 %v683
    %v752 = vunpack.c.l.b16 %v684
    %v753 = vunpack.c.l.b16 %v685
    %v754 = vunpack.c.l.b16 %v686
    %v755 = vunpack.c.l.b16 %v687
    %v756 = vunpack.c.l.b16 %v688
    %v757 = vunpack.c.l.b16 %v689
    %v758 = vunpack.c.l.b16 %v690
    %v759 = vunpack.c.l.b16 %v691
    %v760 = vunpack.c.l.b16 %v692
    %v761 = vunpack.c.l.b16 %v693
    %v762 = vunpack.c.l.b16 %v694
    %v763 = vunpack.c.l.b16 %v695
    %v764 = vunpack.c.l.b16 %v696
    %v765 = vunpack.c.l.b16 %v697
    %v766 = vunpack.c.l.b16 %v698
    %v767 = vunpack.c.l.b16 %v699
    %v768 = vunpack.c.l.b16 %v700
    %v769 = vunpack.c.l.b16 %v701
    %v770 = vunpack.c.l.b16 %v702
    %v771 = vunpack.c.l.b16 %v703
    %v772 = vpack.c.b16 %v741, %v740
    %v773 = vpack.c.b16 %v743, %v742
    %v774 = vpack.c.b16 %v745, %v744
    %v775 = vpack.c.b16 %v747, %v746
    %v776 = vpack.c.b16 %v749, %v748
    %v777 = vpack.c.b16 %v751, %v750
    %v778 = vpack.c.b16 %v753, %v752
    %v779 = vpack.c.b16 %v755, %v754
    %v780 = vpack.c.b16 %v757, %v756
    %v781 = vpack.c.b16 %v759, %v758
    %v782 = vpack.c.b16 %v761, %v760
    %v783 = vpack.c.b16 %v763, %v762
    %v784 = vpack.c.b16 %v765, %v764
    %v785 = vpack.c.b16 %v767, %v766
    %v786 = vpack.c.b16 %v769, %v768
    %v787 = vpack.c.b16 %v771, %v770
    %804 = vmatprep.subr.bf16.mxu0 0
    %805 = vmatpush1.bf16.msra.mxu0 %v779
    %806 = vmatprep.subr.bf16.mxu0 0
    %807 = vmatpush1.bf16.msra.mxu0 %v778
    %808 = vmatprep.subr.bf16.mxu0 0
    %809 = vmatpush1.bf16.msra.mxu0 %v777
    %810 = vmatprep.subr.bf16.mxu0 0
    %811 = vmatpush1.bf16.msra.mxu0 %v776
    %812 = vmatprep.subr.bf16.mxu0 0
    %813 = vmatpush1.bf16.msra.mxu0 %v775
    %814 = vmatprep.subr.bf16.mxu0 0
    %815 = vmatpush1.bf16.msra.mxu0 %v774
    %816 = vmatprep.subr.bf16.mxu0 0
    %817 = vmatpush1.bf16.msra.mxu0 %v773
    %818 = vmatprep.subr.bf16.mxu0 0
    %819 = vmatpush1.bf16.msra.mxu0 %v772
    %820 = vmatprep.subr.bf16.mxu0 0
    %821 = vmatpush2.bf16.msra.mxu0 %v787
    %822 = vmatprep.subr.bf16.mxu0 0
    %823 = vmatpush2.bf16.msra.mxu0 %v786
    %824 = vmatprep.subr.bf16.mxu0 0
    %825 = vmatpush2.bf16.msra.mxu0 %v785
    %826 = vmatprep.subr.bf16.mxu0 0
    %827 = vmatpush2.bf16.msra.mxu0 %v784
    %828 = vmatprep.subr.bf16.mxu0 0
    %829 = vmatpush2.bf16.msra.mxu0 %v783
    %830 = vmatprep.subr.bf16.mxu0 0
    %831 = vmatpush2.bf16.msra.mxu0 %v782
    %832 = vmatprep.subr.bf16.mxu0 0
    %833 = vmatpush2.bf16.msra.mxu0 %v781
    %834 = vmatprep.subr.bf16.mxu0 0
    %835 = vmatpush2.bf16.msra.mxu0 %v780
    %836 = vmatprep.mubr.bf16.mxu0 %v671
    %837 = vmatmul.mubr.bf16.gmra.mxu0 %v670
    %v838 = vpop.f32.mrf.mxu0
    %v839 = vadd.f32 %v707, %v838
    %v840 = vpop.f32.mrf.mxu0
    %v841 = vpop.f32.mrf.mxu0
    %v842 = vpop.f32.mrf.mxu0
    %843 = vdwg.mxu0
    %vm844 = vcmask 64512
    %845 = vst.msk [vmem:[%s6] sm:$0xff] %vm844, %v839
    // Predicated region
    $region34: #{dqn_forward.1} parent=1 // pred_check
      _
    $region35: #{dqn_forward.1} parent=1 // pred_check_branch
      %847 = sbr.rel (0) target = $region37
    $region36: #{dqn_forward.1} parent=1 // pred_region
      _
    $region37: #{dqn_forward.1} parent=1 // pred_fallthru
      _
    // Predicated region
    $region38: #{dqn_forward.1} parent=1 // pred_check
      _
    $region39: #{dqn_forward.1} parent=1 // pred_check_branch
      %849 = sbr.rel (0) target = $region41
    $region40: #{dqn_forward.1} parent=1 // pred_region
      _
    $region41: #{dqn_forward.1} parent=1 // pred_fallthru
      _
    %850 = vsyncpa [#allocation3], 1
    %851 = vsyncpa [#allocation5], 1

</llo_original>
